<compile_context>
chip_gen: v6e
topology: v6e:2x2x1
jax: 0.10.0
libtpu: 0.0.40
codegen_flags: <defaults>
</compile_context>

<pallas_src>
import jax
import jax.numpy as jnp
from jax.experimental import pallas as pl
from jax.experimental.pallas import tpu as pltpu

# ----------------------- model dimensions (small, synthetic) ----------------
N, C_IN, H, W = 2, 4, 16, 16      # input images  [n, C, H, W]
C_MID = 32                        # stem channels
C_OUT = 8                         # head channels (num_anchors * num_classes proxy)
KH = KW = 3                       # stem kernel size (stride 1, same padding)
K = KH * KW * C_IN                # im2col contraction size = 36
M = N * H * W                     # total pixels = 512 (lane axis inside kernel)


# ----------------------------- Pallas kernel --------------------------------
def stem_head_kernel(xt_ref, ws_ref, bs_ref, wh_ref, bh_ref, o_ref):
    """Whole batch in one step, transposed (channel, pixel) layout.

    xt_ref: (K, M)        = (36, 512)  im2col patches, pixels on lanes
    ws_ref: (C_MID, K)    = (32, 36)   stem conv weights (transposed)
    bs_ref: (C_MID, 1)                 stem bias
    wh_ref: (C_OUT, C_MID)= (8, 32)    1x1 head weights (transposed)
    bh_ref: (C_OUT, 1)                 head bias
    o_ref : (C_OUT, M)    = (8, 512)   per-pixel class logits (lane-dense)
    """
    # Stem 3x3 conv as ONE im2col matmul on the MXU (also initializes acc).
    feat = jnp.dot(ws_ref[...], xt_ref[...],
                   preferred_element_type=jnp.float32)          # (C_MID, M)
    # bias + ReLU on the VPU (f32 throughout).
    feat = jnp.maximum(feat + bs_ref[...], 0.0)
    # 1x1 head conv == channel matmul on the MXU, + bias.
    logits = jnp.dot(wh_ref[...], feat,
                     preferred_element_type=jnp.float32) + bh_ref[...]
    o_ref[...] = logits.astype(o_ref.dtype)                     # (C_OUT, M)


# ----------------------------- wrapper (glue) --------------------------------
def base_model_forward(img_nchw, w_stem, b_stem, w_head, b_head):
    """img_nchw: [N, C_IN, H, W] float32 -> logits [N, C_OUT, H, W]."""
    n, c, h, w = img_nchw.shape
    assert (n, c, h, w) == (N, C_IN, H, W)

    # --- XLA glue: spatial pad + im2col, arranged as (K, M) = (36, 512). ---
    x_pad = jnp.pad(img_nchw, ((0, 0), (0, 0), (1, 1), (1, 1)))   # (N,C,H+2,W+2)
    taps = [x_pad[:, :, ky:ky + H, kx:kx + W]                     # (N,C,H,W) each
            for ky in range(KH) for kx in range(KW)]
    patches = jnp.stack(taps, axis=0)                             # (9,N,C,H,W)
    patches_t = patches.transpose(0, 2, 1, 3, 4).reshape(K, M)    # (36, 512)

    # Transposed weights / biases so channels sit on sublanes in the kernel.
    ws_t = w_stem.reshape(K, C_MID).T                             # (C_MID, K)
    bs_t = b_stem.reshape(C_MID, 1)                               # (C_MID, 1)
    wh_t = w_head.T                                               # (C_OUT, C_MID)
    bh_t = b_head.reshape(C_OUT, 1)                               # (C_OUT, 1)

    out_t = pl.pallas_call(
        stem_head_kernel,
        out_shape=jax.ShapeDtypeStruct((C_OUT, M), jnp.float32),
        grid=(1,),
        in_specs=[
            pl.BlockSpec((K, M), lambda i: (0, 0)),
            pl.BlockSpec((C_MID, K), lambda i: (0, 0)),
            pl.BlockSpec((C_MID, 1), lambda i: (0, 0)),
            pl.BlockSpec((C_OUT, C_MID), lambda i: (0, 0)),
            pl.BlockSpec((C_OUT, 1), lambda i: (0, 0)),
        ],
        out_specs=pl.BlockSpec((C_OUT, M), lambda i: (0, 0)),
        compiler_params=pltpu.CompilerParams(
            dimension_semantics=("arbitrary",)),
    )(patches_t, ws_t, bs_t, wh_t, bh_t)

    # (C_OUT, N*H*W) -> (N, C_OUT, H, W)  (PyTorch NCHW convention).
    return out_t.reshape(C_OUT, N, H, W).transpose(1, 0, 2, 3)


# --------------------------- deterministic params ----------------------------
def make_params():
    k = jax.random.PRNGKey(0)
    k1, k2, k3, k4 = jax.random.split(k, 4)
    fan_in_stem = KH * KW * C_IN
    w_stem = (jax.random.normal(k1, (KH * KW, C_IN, C_MID), jnp.float32)
              * (2.0 / fan_in_stem) ** 0.5)
    b_stem = jnp.zeros((1, C_MID), jnp.float32) + 0.01
    w_head = (jax.random.normal(k2, (C_MID, C_OUT), jnp.float32)
              * (2.0 / C_MID) ** 0.5)
    b_head = jnp.zeros((1, C_OUT), jnp.float32) - 0.1
    del k3, k4
    return w_stem, b_stem, w_head, b_head


# --------------------------------- reference ---------------------------------
def reference_forward(img_nchw, w_stem, b_stem, w_head, b_head):
    x_pad = jnp.pad(img_nchw, ((0, 0), (0, 0), (1, 1), (1, 1)))
    acc = jnp.zeros((img_nchw.shape[0], C_MID, H, W), jnp.float32)
    for ky in range(KH):
        for kx in range(KW):
            patch = x_pad[:, :, ky:ky + H, kx:kx + W]        # (N, C_IN, H, W)
            acc = acc + jnp.einsum('nchw,cm->nmhw', patch, w_stem[ky * KW + kx])
    feat = jnp.maximum(acc + b_stem.reshape(1, C_MID, 1, 1), 0.0)
    logits = (jnp.einsum('nmhw,mo->nohw', feat, w_head)
              + b_head.reshape(1, C_OUT, 1, 1))
    return logits


if __name__ == "__main__":
    key = jax.random.PRNGKey(0)
    img = jax.random.normal(key, (N, C_IN, H, W), jnp.float32)
    params = make_params()

    out = base_model_forward(img, *params)
    out = jax.block_until_ready(out)

    ref = reference_forward(img, *params)
    assert out.shape == (N, C_OUT, H, W), out.shape
    assert jnp.allclose(out, ref, atol=1e-3, rtol=1e-3), "mismatch vs reference"

    print("KERNEL_OK")
</pallas_src>

<mosaic_0001>
module attributes {stable_mosaic.version = 11 : i64} {
  func.func @stem_head_kernel(%arg0: i32, %arg1: memref<36x512xf32, #tpu.memory_space<vmem>>, %arg2: memref<32x36xf32, #tpu.memory_space<vmem>>, %arg3: memref<32x1xf32, #tpu.memory_space<vmem>>, %arg4: memref<8x32xf32, #tpu.memory_space<vmem>>, %arg5: memref<8x1xf32, #tpu.memory_space<vmem>>, %arg6: memref<8x512xf32, #tpu.memory_space<vmem>>) attributes {dimension_semantics = [#tpu.dimension_semantics<arbitrary>], iteration_bounds = array<i64: 1>, scalar_prefetch = 0 : i64, scratch_operands = 0 : i64, tpu.core_type = #tpu.core_type<tc>, window_params = [{pipeline_mode = #tpu.pipeline_mode<synchronous>, transform_indices = @transform_0, window_bounds = array<i64: 36, 512>}, {pipeline_mode = #tpu.pipeline_mode<synchronous>, transform_indices = @transform_1, window_bounds = array<i64: 32, 36>}, {pipeline_mode = #tpu.pipeline_mode<synchronous>, transform_indices = @transform_2, window_bounds = array<i64: 32, 1>}, {pipeline_mode = #tpu.pipeline_mode<synchronous>, transform_indices = @transform_3, window_bounds = array<i64: 8, 32>}, {pipeline_mode = #tpu.pipeline_mode<synchronous>, transform_indices = @transform_4, window_bounds = array<i64: 8, 1>}, {pipeline_mode = #tpu.pipeline_mode<synchronous>, transform_indices = @transform_5, window_bounds = array<i64: 8, 512>}]} {
    %c0 = arith.constant 0 : index
    %c0_0 = arith.constant 0 : index
    %0 = vector.load %arg2[%c0, %c0_0] : memref<32x36xf32, #tpu.memory_space<vmem>>, vector<32x36xf32>
    %c0_1 = arith.constant 0 : index
    %c0_2 = arith.constant 0 : index
    %1 = vector.load %arg1[%c0_1, %c0_2] : memref<36x512xf32, #tpu.memory_space<vmem>>, vector<36x512xf32>
    %cst = arith.constant dense<0.000000e+00> : vector<32x512xf32>
    %2 = tpu.matmul %0, %1, %cst {dimension_numbers = #tpu.dot_dimension_numbers<[1], [0], [0], [1], [0, 0, 1, 1], [], []>} : vector<32x36xf32>, vector<36x512xf32>, vector<32x512xf32> -> vector<32x512xf32>
    %c0_3 = arith.constant 0 : index
    %c0_4 = arith.constant 0 : index
    %3 = vector.load %arg3[%c0_3, %c0_4] : memref<32x1xf32, #tpu.memory_space<vmem>>, vector<32x1xf32>
    %4 = vector.broadcast %3 : vector<32x1xf32> to vector<32x512xf32>
    %5 = arith.addf %2, %4 : vector<32x512xf32>
    %cst_5 = arith.constant 0.000000e+00 : f32
    %6 = vector.broadcast %cst_5 : f32 to vector<32x512xf32>
    %7 = arith.maximumf %5, %6 : vector<32x512xf32>
    %c0_6 = arith.constant 0 : index
    %c0_7 = arith.constant 0 : index
    %8 = vector.load %arg4[%c0_6, %c0_7] : memref<8x32xf32, #tpu.memory_space<vmem>>, vector<8x32xf32>
    %cst_8 = arith.constant dense<0.000000e+00> : vector<8x512xf32>
    %9 = tpu.matmul %8, %7, %cst_8 {dimension_numbers = #tpu.dot_dimension_numbers<[1], [0], [0], [1], [0, 0, 1, 1], [], []>} : vector<8x32xf32>, vector<32x512xf32>, vector<8x512xf32> -> vector<8x512xf32>
    %c0_9 = arith.constant 0 : index
    %c0_10 = arith.constant 0 : index
    %10 = vector.load %arg5[%c0_9, %c0_10] : memref<8x1xf32, #tpu.memory_space<vmem>>, vector<8x1xf32>
    %11 = vector.broadcast %10 : vector<8x1xf32> to vector<8x512xf32>
    %12 = arith.addf %9, %11 : vector<8x512xf32>
    %c0_11 = arith.constant 0 : index
    %c0_12 = arith.constant 0 : index
    %13 = vector.load %arg6[%c0_11, %c0_12] : memref<8x512xf32, #tpu.memory_space<vmem>>, vector<8x512xf32>
    tpu.vector_store %arg6[%c0_11, %c0_12], %12 {strides = array<i32>} : memref<8x512xf32, #tpu.memory_space<vmem>>, vector<8x512xf32>,
    return
  }
  func.func @transform_0(%arg0: i32) -> (i32, i32) {
    %c0_i32 = arith.constant 0 : i32
    %c0_i32_0 = arith.constant 0 : i32
    %c0_i32_1 = arith.constant 0 : i32
    return %c0_i32, %c0_i32_0 : i32, i32
  }
  func.func @transform_1(%arg0: i32) -> (i32, i32) {
    %c0_i32 = arith.constant 0 : i32
    %c0_i32_0 = arith.constant 0 : i32
    %c0_i32_1 = arith.constant 0 : i32
    return %c0_i32, %c0_i32_0 : i32, i32
  }
  func.func @transform_2(%arg0: i32) -> (i32, i32) {
    %c0_i32 = arith.constant 0 : i32
    %c0_i32_0 = arith.constant 0 : i32
    %c0_i32_1 = arith.constant 0 : i32
    return %c0_i32, %c0_i32_0 : i32, i32
  }
  func.func @transform_3(%arg0: i32) -> (i32, i32) {
    %c0_i32 = arith.constant 0 : i32
    %c0_i32_0 = arith.constant 0 : i32
    %c0_i32_1 = arith.constant 0 : i32
    return %c0_i32, %c0_i32_0 : i32, i32
  }
  func.func @transform_4(%arg0: i32) -> (i32, i32) {
    %c0_i32 = arith.constant 0 : i32
    %c0_i32_0 = arith.constant 0 : i32
    %c0_i32_1 = arith.constant 0 : i32
    return %c0_i32, %c0_i32_0 : i32, i32
  }
  func.func @transform_5(%arg0: i32) -> (i32, i32) {
    %c0_i32 = arith.constant 0 : i32
    %c0_i32_0 = arith.constant 0 : i32
    %c0_i32_1 = arith.constant 0 : i32
    return %c0_i32, %c0_i32_0 : i32, i32
  }
}

</mosaic_0001>

<llo_original>
// kernel: tpu_custom_call.1
$region0: #{tpu_custom_call.1}
  #allocation0 [shape = 'u32[]', space=smem, size = 0x4, offset = 0x4, fixed_abs, tag = 'smem constant byte address 0x4 - core index']
  #allocation1 [shape = 'u32[144,128]{1,0:T(1,128)}', space=vmem, size = 0x12000, scoped, tag = 'internal scratch']
  %s0 = inlined_call_operand.hbm [shape: f32[36,512], index: 0, kind: input, shape index: {}]
  %s1 = inlined_call_operand.vmem [shape: f32[32,36], index: 1, kind: input, shape index: {}]
  %s2 = inlined_call_operand.vmem [shape: f32[32,1], index: 2, kind: input, shape index: {}]
  %s3 = inlined_call_operand.vmem [shape: f32[8,32], index: 3, kind: input, shape index: {}]
  %s4 = inlined_call_operand.vmem [shape: f32[8,1], index: 4, kind: input, shape index: {}]
  %s5 = inlined_call_operand.hbm [shape: f32[8,512], index: 5, kind: output, shape index: {}]
  %s6 = sld [smem:[#allocation0]]
  $region34: #{tpu_custom_call.1} parent=0
    _
  %s8 = ssub.s32 1, %s6
  %s9 = scalar_select 0, %s8, %s6
  $region1: #{tpu_custom_call.1} parent=0
    #allocation2 [shape = 'u8[81920]{0}', space=vmem, size = 0x14000, scoped, tag = 'input window, operand 0, single buffered']
    #allocation3 [shape = 's32[1]{0}', space=sflag, size = 0x4, scoped, tag = 'scoped memory for tpu_custom_call.1']
    #allocation4 [shape = 's32[1]{0}', space=sflag, size = 0x4, scoped, tag = 'scoped memory for tpu_custom_call.1']
    #allocation5 [shape = 'u8[16384]{0}', space=vmem, size = 0x4000, scoped, tag = 'output window, operand 0, single buffered']
    %10 = vsyncpa [#allocation3], 0
    %11 = vsyncpa [#allocation4], 0
    // Predicated region
    $region2: #{tpu_custom_call.1} parent=1 // pred_check
      _
    $region3: #{tpu_custom_call.1} parent=1 // pred_check_branch
      %13 = sbr.rel (0) target = $region5
    $region4: #{tpu_custom_call.1} parent=1 // pred_region
      %s15 = ssub.s32 2560, 2560
      %16 = vsyncadd [#allocation3], %s15
      %s17 = sshll.u32 [#allocation2], 4
      %s18 = int_to_ptr.vmem [resolvable:$true] %s17
      %23 = dma.hbm_to_vmem [thread:$0]  %s0, 2560, %s18, [#allocation3], 512, 512, 32
    $region5: #{tpu_custom_call.1} parent=1 // pred_fallthru
      _
    // Predicated region
    $region6: #{tpu_custom_call.1} parent=1 // pred_check
      _
    $region7: #{tpu_custom_call.1} parent=1 // pred_check_branch
      %25 = sbr.rel (0) target = $region9
    $region8: #{tpu_custom_call.1} parent=1 // pred_region
      _
    $region9: #{tpu_custom_call.1} parent=1 // pred_fallthru
      _
    // Predicated region
    $region10: #{tpu_custom_call.1} parent=1 // pred_check
      _
    $region11: #{tpu_custom_call.1} parent=1 // pred_check_branch
      %27 = sbr.rel (0) target = $region13
    $region12: #{tpu_custom_call.1} parent=1 // pred_region
      _
    $region13: #{tpu_custom_call.1} parent=1 // pred_fallthru
      _
    // Predicated region
    $region14: #{tpu_custom_call.1} parent=1 // pred_check
      _
    $region15: #{tpu_custom_call.1} parent=1 // pred_check_branch
      %29 = sbr.rel (0) target = $region17
    $region16: #{tpu_custom_call.1} parent=1 // pred_region
      _
    $region17: #{tpu_custom_call.1} parent=1 // pred_fallthru
      _
    // Predicated region
    $region18: #{tpu_custom_call.1} parent=1 // pred_check
      _
    $region19: #{tpu_custom_call.1} parent=1 // pred_check_branch
      %31 = sbr.rel (0) target = $region21
    $region20: #{tpu_custom_call.1} parent=1 // pred_region
      _
    $region21: #{tpu_custom_call.1} parent=1 // pred_fallthru
      _
    // Predicated region
    $region22: #{tpu_custom_call.1} parent=1 // pred_check
      _
    $region23: #{tpu_custom_call.1} parent=1 // pred_check_branch
      %33 = sbr.rel (0) target = $region25
    $region24: #{tpu_custom_call.1} parent=1 // pred_region
      %34 = dma.done [#allocation3], 2560
    $region25: #{tpu_custom_call.1} parent=1 // pred_fallthru
      _
    %v35 = vld [vmem:[%s1] sm:$0xff]
    %v36 = vld [vmem:[%s1 + $0x8] sm:$0xff]
    %v37 = vld [vmem:[%s1 + $0x10] sm:$0xff]
    %v38 = vld [vmem:[%s1 + $0x18] sm:$0xff]
    %v39 = vld [vmem:[#allocation2] sm:$0xff]
    %v40 = vld [vmem:[#allocation2 + $0x8] sm:$0xff]
    %v41 = vld [vmem:[#allocation2 + $0x10] sm:$0xff]
    %v42 = vld [vmem:[#allocation2 + $0x18] sm:$0xff]
    %v43 = vld [vmem:[#allocation2 + $0x20] sm:$0xff]
    %v44 = vld [vmem:[#allocation2 + $0x28] sm:$0xff]
    %v45 = vld [vmem:[#allocation2 + $0x30] sm:$0xff]
    %v46 = vld [vmem:[#allocation2 + $0x38] sm:$0xff]
    %v47 = vld [vmem:[#allocation2 + $0x40] sm:$0xff]
    %v48 = vld [vmem:[#allocation2 + $0x48] sm:$0xff]
    %v49 = vld [vmem:[#allocation2 + $0x50] sm:$0xff]
    %v50 = vld [vmem:[#allocation2 + $0x58] sm:$0xff]
    %v51 = vld [vmem:[#allocation2 + $0x60] sm:$0xff]
    %v52 = vld [vmem:[#allocation2 + $0x68] sm:$0xff]
    %v53 = vld [vmem:[#allocation2 + $0x70] sm:$0xff]
    %v54 = vld [vmem:[#allocation2 + $0x78] sm:$0xff]
    %v55 = vld [vmem:[#allocation2 + $0x80] sm:$0xf]
    %v56 = vld [vmem:[#allocation2 + $0x88] sm:$0xf]
    %v57 = vld [vmem:[#allocation2 + $0x90] sm:$0xf]
    %v58 = vld [vmem:[#allocation2 + $0x98] sm:$0xf]
    %v59 = vld [vmem:[%s2] sm:$0xff]
    %v60 = vld [vmem:[%s2 + $0x8] sm:$0xff]
    %v61 = vld [vmem:[%s2 + $0x10] sm:$0xff]
    %v62 = vld [vmem:[%s2 + $0x18] sm:$0xff]
    %64 = vset.pattern.permute.xlu0 0
    %65 = vperm.xlu0 %64, %v59
    %v66 = vpop.permute.xlu0 %65
    %69 = vset.pattern.permute.xlu0 0
    %70 = vperm.xlu0 %69, %v60
    %v71 = vpop.permute.xlu0 %70
    %74 = vset.pattern.permute.xlu0 0
    %75 = vperm.xlu0 %74, %v61
    %v76 = vpop.permute.xlu0 %75
    %79 = vset.pattern.permute.xlu0 0
    %80 = vperm.xlu0 %79, %v62
    %v81 = vpop.permute.xlu0 %80
    %vm83 = vcmask 293888
    %v85 = vsel %vm83, %v35, 0
    %v88 = vsel %vm83, %v36, 0
    %v91 = vsel %vm83, %v37, 0
    %v94 = vsel %vm83, %v38, 0
    %vm96 = vcmask 1043456
    %v98 = vsel %vm96, %v55, 0
    %v101 = vsel %vm96, %v56, 0
    %v104 = vsel %vm96, %v57, 0
    %v107 = vsel %vm96, %v58, 0
    %109 = vmatprep.subr.mxu0 0.0
    %110 = vmatpush1.msra.mxu0 0.0
    %111 = vmatprep.subr.mxu0 0.0
    %112 = vmatpush1.msra.mxu0 0.0
    %113 = vmatprep.subr.mxu0 0.0
    %114 = vmatpush1.msra.mxu0 0.0
    %115 = vmatprep.subr.mxu0 0.0
    %116 = vmatpush1.msra.mxu0 0.0
    %117 = vmatprep.subr.mxu0 0.0
    %118 = vmatpush1.msra.mxu0 0.0
    %119 = vmatprep.subr.mxu0 0.0
    %120 = vmatpush1.msra.mxu0 0.0
    %121 = vmatprep.subr.mxu0 0.0
    %122 = vmatpush1.msra.mxu0 0.0
    %123 = vmatprep.subr.mxu0 0.0
    %124 = vmatpush1.msra.mxu0 0.0
    %125 = vmatprep.subr.mxu0 0.0
    %126 = vmatpush1.msra.mxu0 0.0
    %127 = vmatprep.subr.mxu0 0.0
    %128 = vmatpush1.msra.mxu0 0.0
    %129 = vmatprep.subr.mxu0 0.0
    %130 = vmatpush1.msra.mxu0 0.0
    %131 = vmatprep.subr.mxu0 %v101
    %132 = vmatpush1.msra.mxu0 %v98
    %133 = vmatprep.subr.mxu0 %v52
    %134 = vmatpush1.msra.mxu0 %v51
    %135 = vmatprep.subr.mxu0 %v48
    %136 = vmatpush1.msra.mxu0 %v47
    %137 = vmatprep.subr.mxu0 %v44
    %138 = vmatpush1.msra.mxu0 %v43
    %139 = vmatprep.subr.mxu0 %v40
    %140 = vmatpush1.msra.mxu0 %v39
    %141 = vmatprep.subr.mxu0 0.0
    %142 = vmatpush2.msra.mxu0 0.0
    %143 = vmatprep.subr.mxu0 0.0
    %144 = vmatpush2.msra.mxu0 0.0
    %145 = vmatprep.subr.mxu0 0.0
    %146 = vmatpush2.msra.mxu0 0.0
    %147 = vmatprep.subr.mxu0 0.0
    %148 = vmatpush2.msra.mxu0 0.0
    %149 = vmatprep.subr.mxu0 0.0
    %150 = vmatpush2.msra.mxu0 0.0
    %151 = vmatprep.subr.mxu0 0.0
    %152 = vmatpush2.msra.mxu0 0.0
    %153 = vmatprep.subr.mxu0 0.0
    %154 = vmatpush2.msra.mxu0 0.0
    %155 = vmatprep.subr.mxu0 0.0
    %156 = vmatpush2.msra.mxu0 0.0
    %157 = vmatprep.subr.mxu0 0.0
    %158 = vmatpush2.msra.mxu0 0.0
    %159 = vmatprep.subr.mxu0 0.0
    %160 = vmatpush2.msra.mxu0 0.0
    %161 = vmatprep.subr.mxu0 0.0
    %162 = vmatpush2.msra.mxu0 0.0
    %163 = vmatprep.subr.mxu0 0.0
    %164 = vmatpush2.msra.mxu0 0.0
    %165 = vmatprep.subr.mxu0 0.0
    %166 = vmatpush2.msra.mxu0 0.0
    %167 = vmatprep.subr.mxu0 0.0
    %168 = vmatpush2.msra.mxu0 0.0
    %169 = vmatprep.subr.mxu0 0.0
    %170 = vmatpush2.msra.mxu0 0.0
    %171 = vmatprep.subr.mxu0 0.0
    %172 = vmatpush2.msra.mxu0 0.0
    %173 = vmatprep.mubr.f32.mxu0 0.0
    %174 = vmatmul.mubr.f32.gmra.mxu0 %v85
    %v175 = vpop.f32.mrf.mxu0
    %v176 = vadd.f32 %v66, %v175
    %v177 = vpop.f32.mrf.mxu0
    %v178 = vadd.f32 %v66, %v177
    %179 = vmatprep.mubr.f32.mxu0 0.0
    %180 = vmatmul.mubr.f32.gmra.mxu0 %v88
    %v181 = vpop.f32.mrf.mxu0
    %v182 = vadd.f32 %v71, %v181
    %v183 = vpop.f32.mrf.mxu0
    %v184 = vadd.f32 %v71, %v183
    %185 = vmatprep.mubr.f32.mxu0 0.0
    %186 = vmatmul.mubr.f32.gmra.mxu0 %v91
    %v187 = vpop.f32.mrf.mxu0
    %v188 = vadd.f32 %v76, %v187
    %v189 = vpop.f32.mrf.mxu0
    %v190 = vadd.f32 %v76, %v189
    %191 = vmatprep.mubr.f32.mxu0 0.0
    %192 = vmatmul.mubr.f32.gmra.mxu0 %v94
    %v193 = vpop.f32.mrf.mxu0
    %v194 = vadd.f32 %v81, %v193
    %v195 = vpop.f32.mrf.mxu0
    %v196 = vadd.f32 %v81, %v195
    %197 = vdwg.mxu0
    %198 = vmatprep.subr.mxu0 0.0
    %199 = vmatpush1.msra.mxu0 0.0
    %200 = vmatprep.subr.mxu0 0.0
    %201 = vmatpush1.msra.mxu0 0.0
    %202 = vmatprep.subr.mxu0 0.0
    %203 = vmatpush1.msra.mxu0 0.0
    %204 = vmatprep.subr.mxu0 0.0
    %205 = vmatpush1.msra.mxu0 0.0
    %206 = vmatprep.subr.mxu0 0.0
    %207 = vmatpush1.msra.mxu0 0.0
    %208 = vmatprep.subr.mxu0 0.0
    %209 = vmatpush1.msra.mxu0 0.0
    %210 = vmatprep.subr.mxu0 0.0
    %211 = vmatpush1.msra.mxu0 0.0
    %212 = vmatprep.subr.mxu0 0.0
    %213 = vmatpush1.msra.mxu0 0.0
    %214 = vmatprep.subr.mxu0 0.0
    %215 = vmatpush1.msra.mxu0 0.0
    %216 = vmatprep.subr.mxu0 0.0
    %217 = vmatpush1.msra.mxu0 0.0
    %218 = vmatprep.subr.mxu0 0.0
    %219 = vmatpush1.msra.mxu0 0.0
    %220 = vmatprep.subr.mxu0 %v107
    %221 = vmatpush1.msra.mxu0 %v104
    %222 = vmatprep.subr.mxu0 %v54
    %223 = vmatpush1.msra.mxu0 %v53
    %224 = vmatprep.subr.mxu0 %v50
    %225 = vmatpush1.msra.mxu0 %v49
    %226 = vmatprep.subr.mxu0 %v46
    %227 = vmatpush1.msra.mxu0 %v45
    %228 = vmatprep.subr.mxu0 %v42
    %229 = vmatpush1.msra.mxu0 %v41
    %230 = vmatprep.subr.mxu0 0.0
    %231 = vmatpush2.msra.mxu0 0.0
    %232 = vmatprep.subr.mxu0 0.0
    %233 = vmatpush2.msra.mxu0 0.0
    %234 = vmatprep.subr.mxu0 0.0
    %235 = vmatpush2.msra.mxu0 0.0
    %236 = vmatprep.subr.mxu0 0.0
    %237 = vmatpush2.msra.mxu0 0.0
    %238 = vmatprep.subr.mxu0 0.0
    %239 = vmatpush2.msra.mxu0 0.0
    %240 = vmatprep.subr.mxu0 0.0
    %241 = vmatpush2.msra.mxu0 0.0
    %242 = vmatprep.subr.mxu0 0.0
    %243 = vmatpush2.msra.mxu0 0.0
    %244 = vmatprep.subr.mxu0 0.0
    %245 = vmatpush2.msra.mxu0 0.0
    %246 = vmatprep.subr.mxu0 0.0
    %247 = vmatpush2.msra.mxu0 0.0
    %248 = vmatprep.subr.mxu0 0.0
    %249 = vmatpush2.msra.mxu0 0.0
    %250 = vmatprep.subr.mxu0 0.0
    %251 = vmatpush2.msra.mxu0 0.0
    %252 = vmatprep.subr.mxu0 0.0
    %253 = vmatpush2.msra.mxu0 0.0
    %254 = vmatprep.subr.mxu0 0.0
    %255 = vmatpush2.msra.mxu0 0.0
    %256 = vmatprep.subr.mxu0 0.0
    %257 = vmatpush2.msra.mxu0 0.0
    %258 = vmatprep.subr.mxu0 0.0
    %259 = vmatpush2.msra.mxu0 0.0
    %260 = vmatprep.subr.mxu0 0.0
    %261 = vmatpush2.msra.mxu0 0.0
    %262 = vmatprep.mubr.f32.mxu0 0.0
    %263 = vmatmul.mubr.f32.gmra.mxu0 %v85
    %v264 = vpop.f32.mrf.mxu0
    %v265 = vadd.f32 %v66, %v264
    %v266 = vpop.f32.mrf.mxu0
    %v267 = vadd.f32 %v66, %v266
    %268 = vmatprep.mubr.f32.mxu0 0.0
    %269 = vmatmul.mubr.f32.gmra.mxu0 %v88
    %v270 = vpop.f32.mrf.mxu0
    %v271 = vadd.f32 %v71, %v270
    %v272 = vpop.f32.mrf.mxu0
    %v273 = vadd.f32 %v71, %v272
    %274 = vmatprep.mubr.f32.mxu0 0.0
    %275 = vmatmul.mubr.f32.gmra.mxu0 %v91
    %v276 = vpop.f32.mrf.mxu0
    %v277 = vadd.f32 %v76, %v276
    %v278 = vpop.f32.mrf.mxu0
    %v279 = vadd.f32 %v76, %v278
    %280 = vmatprep.mubr.f32.mxu0 0.0
    %281 = vmatmul.mubr.f32.gmra.mxu0 %v94
    %v282 = vpop.f32.mrf.mxu0
    %v283 = vadd.f32 %v81, %v282
    %v284 = vpop.f32.mrf.mxu0
    %v285 = vadd.f32 %v81, %v284
    %286 = vdwg.mxu0
    %v287 = vmax.f32 %v176, 0.0
    %v288 = vmax.f32 %v178, 0.0
    %v289 = vmax.f32 %v265, 0.0
    %v290 = vmax.f32 %v267, 0.0
    %v291 = vmax.f32 %v182, 0.0
    %v292 = vmax.f32 %v184, 0.0
    %v293 = vmax.f32 %v271, 0.0
    %v294 = vmax.f32 %v273, 0.0
    %v295 = vmax.f32 %v188, 0.0
    %v296 = vmax.f32 %v190, 0.0
    %v297 = vmax.f32 %v277, 0.0
    %v298 = vmax.f32 %v279, 0.0
    %v299 = vmax.f32 %v194, 0.0
    %v300 = vmax.f32 %v196, 0.0
    %v301 = vmax.f32 %v283, 0.0
    %v302 = vmax.f32 %v285, 0.0
    %v303 = vld [vmem:[%s3] sm:$0xff]
    %v304 = vld [vmem:[%s4] sm:$0xff]
    %306 = vset.pattern.permute.xlu0 0
    %307 = vperm.xlu0 %306, %v304
    %v308 = vpop.permute.xlu0 %307
    %vm310 = vcmask 261120
    %v312 = vsel %vm310, %v303, 0
    %314 = vmatprep.subr.mxu0 0.0
    %315 = vmatpush1.msra.mxu0 0.0
    %316 = vmatprep.subr.mxu0 0.0
    %317 = vmatpush1.msra.mxu0 0.0
    %318 = vmatprep.subr.mxu0 0.0
    %319 = vmatpush1.msra.mxu0 0.0
    %320 = vmatprep.subr.mxu0 0.0
    %321 = vmatpush1.msra.mxu0 0.0
    %322 = vmatprep.subr.mxu0 0.0
    %323 = vmatpush1.msra.mxu0 0.0
    %324 = vmatprep.subr.mxu0 0.0
    %325 = vmatpush1.msra.mxu0 0.0
    %326 = vmatprep.subr.mxu0 0.0
    %327 = vmatpush1.msra.mxu0 0.0
    %328 = vmatprep.subr.mxu0 0.0
    %329 = vmatpush1.msra.mxu0 0.0
    %330 = vmatprep.subr.mxu0 0.0
    %331 = vmatpush1.msra.mxu0 0.0
    %332 = vmatprep.subr.mxu0 0.0
    %333 = vmatpush1.msra.mxu0 0.0
    %334 = vmatprep.subr.mxu0 0.0
    %335 = vmatpush1.msra.mxu0 0.0
    %336 = vmatprep.subr.mxu0 0.0
    %337 = vmatpush1.msra.mxu0 0.0
    %338 = vmatprep.subr.mxu0 %v300
    %339 = vmatpush1.msra.mxu0 %v299
    %340 = vmatprep.subr.mxu0 %v296
    %341 = vmatpush1.msra.mxu0 %v295
    %342 = vmatprep.subr.mxu0 %v292
    %343 = vmatpush1.msra.mxu0 %v291
    %344 = vmatprep.subr.mxu0 %v288
    %345 = vmatpush1.msra.mxu0 %v287
    %346 = vmatprep.subr.mxu0 0.0
    %347 = vmatpush2.msra.mxu0 0.0
    %348 = vmatprep.subr.mxu0 0.0
    %349 = vmatpush2.msra.mxu0 0.0
    %350 = vmatprep.subr.mxu0 0.0
    %351 = vmatpush2.msra.mxu0 0.0
    %352 = vmatprep.subr.mxu0 0.0
    %353 = vmatpush2.msra.mxu0 0.0
    %354 = vmatprep.subr.mxu0 0.0
    %355 = vmatpush2.msra.mxu0 0.0
    %356 = vmatprep.subr.mxu0 0.0
    %357 = vmatpush2.msra.mxu0 0.0
    %358 = vmatprep.subr.mxu0 0.0
    %359 = vmatpush2.msra.mxu0 0.0
    %360 = vmatprep.subr.mxu0 0.0
    %361 = vmatpush2.msra.mxu0 0.0
    %362 = vmatprep.subr.mxu0 0.0
    %363 = vmatpush2.msra.mxu0 0.0
    %364 = vmatprep.subr.mxu0 0.0
    %365 = vmatpush2.msra.mxu0 0.0
    %366 = vmatprep.subr.mxu0 0.0
    %367 = vmatpush2.msra.mxu0 0.0
    %368 = vmatprep.subr.mxu0 0.0
    %369 = vmatpush2.msra.mxu0 0.0
    %370 = vmatprep.subr.mxu0 0.0
    %371 = vmatpush2.msra.mxu0 0.0
    %372 = vmatprep.subr.mxu0 0.0
    %373 = vmatpush2.msra.mxu0 0.0
    %374 = vmatprep.subr.mxu0 0.0
    %375 = vmatpush2.msra.mxu0 0.0
    %376 = vmatprep.subr.mxu0 0.0
    %377 = vmatpush2.msra.mxu0 0.0
    %378 = vmatprep.mubr.f32.mxu0 0.0
    %379 = vmatmul.mubr.f32.gmra.mxu0 %v312
    %v380 = vpop.f32.mrf.mxu0
    %v381 = vadd.f32 %v308, %v380
    %v382 = vpop.f32.mrf.mxu0
    %v383 = vadd.f32 %v308, %v382
    %384 = vdwg.mxu0
    %385 = vmatprep.subr.mxu0 0.0
    %386 = vmatpush1.msra.mxu0 0.0
    %387 = vmatprep.subr.mxu0 0.0
    %388 = vmatpush1.msra.mxu0 0.0
    %389 = vmatprep.subr.mxu0 0.0
    %390 = vmatpush1.msra.mxu0 0.0
    %391 = vmatprep.subr.mxu0 0.0
    %392 = vmatpush1.msra.mxu0 0.0
    %393 = vmatprep.subr.mxu0 0.0
    %394 = vmatpush1.msra.mxu0 0.0
    %395 = vmatprep.subr.mxu0 0.0
    %396 = vmatpush1.msra.mxu0 0.0
    %397 = vmatprep.subr.mxu0 0.0
    %398 = vmatpush1.msra.mxu0 0.0
    %399 = vmatprep.subr.mxu0 0.0
    %400 = vmatpush1.msra.mxu0 0.0
    %401 = vmatprep.subr.mxu0 0.0
    %402 = vmatpush1.msra.mxu0 0.0
    %403 = vmatprep.subr.mxu0 0.0
    %404 = vmatpush1.msra.mxu0 0.0
    %405 = vmatprep.subr.mxu0 0.0
    %406 = vmatpush1.msra.mxu0 0.0
    %407 = vmatprep.subr.mxu0 0.0
    %408 = vmatpush1.msra.mxu0 0.0
    %409 = vmatprep.subr.mxu0 %v302
    %410 = vmatpush1.msra.mxu0 %v301
    %411 = vmatprep.subr.mxu0 %v298
    %412 = vmatpush1.msra.mxu0 %v297
    %413 = vmatprep.subr.mxu0 %v294
    %414 = vmatpush1.msra.mxu0 %v293
    %415 = vmatprep.subr.mxu0 %v290
    %416 = vmatpush1.msra.mxu0 %v289
    %417 = vmatprep.subr.mxu0 0.0
    %418 = vmatpush2.msra.mxu0 0.0
    %419 = vmatprep.subr.mxu0 0.0
    %420 = vmatpush2.msra.mxu0 0.0
    %421 = vmatprep.subr.mxu0 0.0
    %422 = vmatpush2.msra.mxu0 0.0
    %423 = vmatprep.subr.mxu0 0.0
    %424 = vmatpush2.msra.mxu0 0.0
    %425 = vmatprep.subr.mxu0 0.0
    %426 = vmatpush2.msra.mxu0 0.0
    %427 = vmatprep.subr.mxu0 0.0
    %428 = vmatpush2.msra.mxu0 0.0
    %429 = vmatprep.subr.mxu0 0.0
    %430 = vmatpush2.msra.mxu0 0.0
    %431 = vmatprep.subr.mxu0 0.0
    %432 = vmatpush2.msra.mxu0 0.0
    %433 = vmatprep.subr.mxu0 0.0
    %434 = vmatpush2.msra.mxu0 0.0
    %435 = vmatprep.subr.mxu0 0.0
    %436 = vmatpush2.msra.mxu0 0.0
    %437 = vmatprep.subr.mxu0 0.0
    %438 = vmatpush2.msra.mxu0 0.0
    %439 = vmatprep.subr.mxu0 0.0
    %440 = vmatpush2.msra.mxu0 0.0
    %441 = vmatprep.subr.mxu0 0.0
    %442 = vmatpush2.msra.mxu0 0.0
    %443 = vmatprep.subr.mxu0 0.0
    %444 = vmatpush2.msra.mxu0 0.0
    %445 = vmatprep.subr.mxu0 0.0
    %446 = vmatpush2.msra.mxu0 0.0
    %447 = vmatprep.subr.mxu0 0.0
    %448 = vmatpush2.msra.mxu0 0.0
    %449 = vmatprep.mubr.f32.mxu0 0.0
    %450 = vmatmul.mubr.f32.gmra.mxu0 %v312
    %v451 = vpop.f32.mrf.mxu0
    %v452 = vadd.f32 %v308, %v451
    %v453 = vpop.f32.mrf.mxu0
    %v454 = vadd.f32 %v308, %v453
    %455 = vdwg.mxu0
    %456 = vst [vmem:[#allocation5] sm:$0xff] %v381
    %457 = vst [vmem:[#allocation5 + $0x8] sm:$0xff] %v383
    %458 = vst [vmem:[#allocation5 + $0x10] sm:$0xff] %v452
    %459 = vst [vmem:[#allocation5 + $0x18] sm:$0xff] %v454
    // Predicated region
    $region26: #{tpu_custom_call.1} parent=1 // pred_check
      _
    $region27: #{tpu_custom_call.1} parent=1 // pred_check_branch
      %461 = sbr.rel (0) target = $region29
    $region28: #{tpu_custom_call.1} parent=1 // pred_region
      %s463 = ssub.s32 512, 512
      %464 = vsyncadd [#allocation4], %s463
      %s466 = sshll.u32 [#allocation5], 4
      %s467 = int_to_ptr.vmem [resolvable:$true] %s466
      %469 = dma.vmem_to_hbm [thread:$0]  %s467, 512, %s5, [#allocation4]
    $region29: #{tpu_custom_call.1} parent=1 // pred_fallthru
      _
    // Predicated region
    $region30: #{tpu_custom_call.1} parent=1 // pred_check
      _
    $region31: #{tpu_custom_call.1} parent=1 // pred_check_branch
      %471 = sbr.rel (0) target = $region33
    $region32: #{tpu_custom_call.1} parent=1 // pred_region
      %472 = dma.done [#allocation4], 512
    $region33: #{tpu_custom_call.1} parent=1 // pred_fallthru
      _
    %473 = vsyncpa [#allocation3], 1
    %474 = vsyncpa [#allocation4], 1

</llo_original>
